<compile_context>
chip_gen: v7x
topology: tpu7x:2x2x1
jax: 0.10.0
libtpu: 0.0.40
codegen_flags: <defaults>
</compile_context>

<pallas_src>
import functools

import numpy as np
import jax
import jax.numpy as jnp
from jax.experimental import pallas as pl
from jax.experimental.pallas import tpu as pltpu

_LANE = 128


def _round_up(x, m):
    return -(-x // m) * m


def _tensorcores_per_chip():
    """2 TensorCores per chip on v7x only; v5e/v6e (and per-core devices) -> 1."""
    try:
        kind = jax.devices()[0].device_kind.lower()
    except Exception:
        return 1
    return 2 if "7" in kind else 1


def _quantile_loss_kernel(preds_ref, target_ref, out_ref, acc_ref, *,
                          quantiles, n_valid, tile, steps_per_core, n_blocks,
                          needs_mask):
    c = pl.program_id(0)          # core axis ("parallel", size n_cores)
    i = pl.program_id(1)          # reduction axis ("arbitrary")

    @pl.when(i == 0)
    def _():
        acc_ref[...] = jnp.zeros_like(acc_ref)

    # Blocks are lane-dense: the flattened batch axis lives on the 128 lanes.
    # bf16 inputs are upcast per block (HBM traffic already halved upstream).
    preds = preds_ref[...].astype(jnp.float32)      # (Q, tile)
    target = target_ref[...].astype(jnp.float32)    # (S, tile)

    n_q = len(quantiles)
    sum_q = float(sum(quantiles))

    # sum_q max(p_q, t): 1 max + 1 add per quantile per target vreg.  The
    # (1, tile) row broadcasts over the S sublanes inside jnp.maximum.
    # TODO(synk): a stride-0 sublane-broadcast load
    #   preds_ref[pl.ds(qi, S, stride=0), :]
    # would move this broadcast into the underused vector-load slot.
    mx = None
    for qi in range(n_q):
        m = jnp.maximum(preds[qi:qi + 1, :], target)            # (S, tile)
        mx = m if mx is None else mx + m

    # S-independent weighted-preds term  wp[n] = sum_q q * p_q[n]  -> (1, tile)
    wp = None
    for qi, q in enumerate(quantiles):
        term = q * preds[qi:qi + 1, :]
        wp = term if wp is None else wp + term

    # total[s, n] = sum_q pinball(q, t[s,n] - p_q[n])
    #             = mx + (sum_q - Q) * t - wp
    total = mx + (sum_q - float(n_q)) * target - wp             # (S, tile)

    if needs_mask:
        blk = c * steps_per_core + i

        @pl.when(blk < n_blocks - 1)          # interior blocks: no mask cost
        def _():
            acc_ref[...] += total

        @pl.when(blk >= n_blocks - 1)         # edge / clamped empty slots
        def _():
            # Mask lanes whose *requested* global column is >= N.  Padding
            # lanes hold unspecified data, so select (not multiply) them to 0.
            col = blk * tile + jax.lax.broadcasted_iota(
                jnp.int32, total.shape, 1)
            acc_ref[...] += jnp.where(col < n_valid, total, 0.0)
    else:
        acc_ref[...] += total                 # VPU adds only

    @pl.when(i == pl.num_programs(1) - 1)
    def _():
        # Single cross-lane/sublane reduction per core, once at the very end.
        out_ref[...] = jnp.sum(acc_ref[...]).reshape(1, 1, 1)


def quantile_loss(preds, target, quantiles, *, tile_n=32768, n_cores=None):
    """Sum of pinball losses.  preds: (..., Q), target: (..., S).

    Call under jax.jit so the cast/transpose to the lane-major (Q,N)/(S,N)
    layout fuses into a single HBM copy per input.  `quantiles` must be a
    concrete (host) sequence of floats (compile-time constants).
    """
    quantiles = tuple(float(q) for q in np.asarray(quantiles).reshape(-1))
    Q = len(quantiles)
    assert preds.shape[-1] == Q
    S = target.shape[-1]
    lead = preds.shape[:-1]
    assert target.shape[:-1] == lead
    N = int(np.prod(lead)) if lead else 1

    if n_cores is None:
        n_cores = _tensorcores_per_chip()

    # Storage dtype: keep bf16 in HBM (halves DMA bytes); everything else f32.
    in_dtype = jnp.bfloat16 if preds.dtype == jnp.bfloat16 else jnp.float32
    in_bytes = 2 if in_dtype == jnp.bfloat16 else 4

    # Lane tile: as large as possible (amortizes the ~0.35us per-grid-step
    # overhead) while double-buffered inputs + the f32 (S, tile) accumulator
    # stay inside a 24 MiB budget that fits every generation's scoped VMEM
    # (v7x: 64 MiB/TC physical; v5e/v6e: 128 MiB).
    per_lane_bytes = 2 * (Q + S) * in_bytes + S * 4
    vmem_budget = 24 * 1024 * 1024
    max_tile = max(_LANE, (vmem_budget // per_lane_bytes) // _LANE * _LANE)
    tile = max(_LANE,
               min(_round_up(tile_n, _LANE), max_tile, _round_up(N, _LANE)))

    nblk = -(-N // tile)                        # number of real lane blocks
    n_cores = max(1, min(n_cores, nblk))
    steps = -(-nblk // n_cores)                 # grid steps per core
    needs_mask = (n_cores * steps * tile != N)

    # Lane-major layout (batch axis on lanes).  No pad; cast only if needed.
    preds2 = preds.reshape(N, Q)
    target2 = target.reshape(N, S)
    if preds2.dtype != in_dtype:
        preds2 = preds2.astype(in_dtype)
    if target2.dtype != in_dtype:
        target2 = target2.astype(in_dtype)
    preds_T = preds2.T                          # (Q, N)
    target_T = target2.T                        # (S, N)

    # Clamp the requested block index so every DMA targets a real block; the
    # extra slots that appear when nblk % n_cores != 0 re-read the last block
    # and are zeroed by the in-kernel mask (keyed off the *unclamped* index).
    def _in_map(c, i):
        return (0, jnp.minimum(c * steps + i, nblk - 1))

    kernel = functools.partial(
        _quantile_loss_kernel, quantiles=quantiles, n_valid=N, tile=tile,
        steps_per_core=steps, n_blocks=nblk, needs_mask=needs_mask)

    vmem_need = per_lane_bytes * tile
    compiler_params = pltpu.CompilerParams(
        # Leading axis shards across TensorCores on v7x (extent 1 elsewhere).
        # TODO(synk): once verified on v7x, switch to pltpu.CORE_PARALLEL to
        # guarantee cross-TC sharding.
        dimension_semantics=("parallel", "arbitrary"),
        vmem_limit_bytes=(32 * 1024 * 1024)
        if vmem_need > 12 * 1024 * 1024 else None,
    )

    out = pl.pallas_call(
        kernel,
        out_shape=jax.ShapeDtypeStruct((n_cores, 1, 1), jnp.float32),
        grid_spec=pltpu.PrefetchScalarGridSpec(
            num_scalar_prefetch=0,
            grid=(n_cores, steps),
            in_specs=[
                pl.BlockSpec((Q, tile), _in_map),   # preds_T  (Q, N)
                pl.BlockSpec((S, tile), _in_map),   # target_T (S, N)
            ],
            # Per-core accumulator cell, resident across the reduction axis.
            out_specs=pl.BlockSpec((1, 1, 1), lambda c, i: (c, 0, 0)),
            scratch_shapes=[pltpu.VMEM((S, tile), jnp.float32)],
        ),
        compiler_params=compiler_params,
    )(preds_T, target_T)

    return jnp.sum(out)     # combine the per-core partial sums


def _reference_loss(preds, target, quantiles):
    q = jnp.asarray(quantiles, jnp.float32)
    e = target[..., :, None] - preds[..., None, :]              # (..., S, Q)
    loss = jnp.maximum(-e, 0.0) @ (1.0 - q) + jnp.maximum(e, 0.0) @ q
    return jnp.sum(loss)


if __name__ == "__main__":
    key = jax.random.PRNGKey(0)
    k1, k2 = jax.random.split(key)

    # Quantiles must contain exactly one 0.5 (mirrors the module's assertion).
    quantiles = np.array([0.05, 0.1, 0.2, 0.3, 0.5, 0.7, 0.8, 0.9],
                         dtype=np.float32)
    assert (quantiles == 0.5).sum() == 1
    Q = quantiles.shape[0]

    B, T, S = 2, 8, 8    # batch, seq, number of target samples
    preds = jax.random.normal(k1, (B, T, Q), dtype=jnp.float32)
    target = jax.random.normal(k2, (B, T, S), dtype=jnp.float32)

    # Jit the whole wrapper so cast + transpose fuse into one copy per input.
    loss_fn = jax.jit(functools.partial(
        quantile_loss, quantiles=tuple(float(q) for q in quantiles)))
    loss = jax.block_until_ready(loss_fn(preds, target))

    ref = _reference_loss(preds, target, quantiles)
    np.testing.assert_allclose(np.asarray(loss), np.asarray(ref),
                               rtol=1e-5, atol=1e-5)
    # TODO(synk): eval_quantile / eval_quantile_x are host-side numpy dataset/
    # model evaluation loops, not kernel work; only forward() is implemented.
    print("KERNEL_OK")
</pallas_src>

<mosaic_0001>
module attributes {stable_mosaic.version = 11 : i64} {
  func.func @_quantile_loss_kernel(%arg0: i32, %arg1: i32, %arg2: memref<8x128xf32, #tpu.memory_space<vmem>>, %arg3: memref<8x128xf32, #tpu.memory_space<vmem>>, %arg4: memref<1x1x1xf32, #tpu.memory_space<vmem>>, %arg5: memref<8x128xf32, #tpu.memory_space<vmem>>) attributes {dimension_semantics = [#tpu.dimension_semantics<parallel>, #tpu.dimension_semantics<arbitrary>], iteration_bounds = array<i64: 1, 1>, scalar_prefetch = 0 : i64, scratch_operands = 1 : i64, tpu.core_type = #tpu.core_type<tc>, window_params = [{transform_indices = @transform_0, window_bounds = array<i64: 8, 128>}, {transform_indices = @transform_1, window_bounds = array<i64: 8, 128>}, {transform_indices = @transform_2, window_bounds = array<i64: 1, 1, 1>}]} {
    %c0_i32 = arith.constant 0 : i32
    %0 = arith.cmpi eq, %arg1, %c0_i32 : i32
    %1 = arith.extui %0 : i1 to i32
    %c0_i32_0 = arith.constant 0 : i32
    %2 = arith.cmpi ne, %1, %c0_i32_0 : i32
    scf.if %2 {
      %cst_18 = arith.constant 0.000000e+00 : f32
      %83 = vector.broadcast %cst_18 : f32 to vector<8x128xf32>
      %c0_19 = arith.constant 0 : index
      %c0_20 = arith.constant 0 : index
      %84 = vector.load %arg5[%c0_19, %c0_20] : memref<8x128xf32, #tpu.memory_space<vmem>>, vector<8x128xf32>
      tpu.vector_store %arg5[%c0_19, %c0_20], %83 {strides = array<i32>} : memref<8x128xf32, #tpu.memory_space<vmem>>, vector<8x128xf32>,
    } else {
    }
    %c0 = arith.constant 0 : index
    %c0_1 = arith.constant 0 : index
    %3 = vector.load %arg2[%c0, %c0_1] : memref<8x128xf32, #tpu.memory_space<vmem>>, vector<8x128xf32>
    %c0_2 = arith.constant 0 : index
    %c0_3 = arith.constant 0 : index
    %4 = vector.load %arg3[%c0_2, %c0_3] : memref<8x128xf32, #tpu.memory_space<vmem>>, vector<8x128xf32>
    %5 = vector.extract_strided_slice %3 {offsets = [0, 0], sizes = [1, 128], strides = [1, 1]} : vector<8x128xf32> to vector<1x128xf32>
    %6 = vector.broadcast %5 : vector<1x128xf32> to vector<8x128xf32>
    %7 = arith.maximumf %6, %4 : vector<8x128xf32>
    %8 = vector.extract_strided_slice %3 {offsets = [1, 0], sizes = [1, 128], strides = [1, 1]} : vector<8x128xf32> to vector<1x128xf32>
    %9 = vector.broadcast %8 : vector<1x128xf32> to vector<8x128xf32>
    %10 = arith.maximumf %9, %4 : vector<8x128xf32>
    %11 = arith.addf %7, %10 : vector<8x128xf32>
    %12 = vector.extract_strided_slice %3 {offsets = [2, 0], sizes = [1, 128], strides = [1, 1]} : vector<8x128xf32> to vector<1x128xf32>
    %13 = vector.broadcast %12 : vector<1x128xf32> to vector<8x128xf32>
    %14 = arith.maximumf %13, %4 : vector<8x128xf32>
    %15 = arith.addf %11, %14 : vector<8x128xf32>
    %16 = vector.extract_strided_slice %3 {offsets = [3, 0], sizes = [1, 128], strides = [1, 1]} : vector<8x128xf32> to vector<1x128xf32>
    %17 = vector.broadcast %16 : vector<1x128xf32> to vector<8x128xf32>
    %18 = arith.maximumf %17, %4 : vector<8x128xf32>
    %19 = arith.addf %15, %18 : vector<8x128xf32>
    %20 = vector.extract_strided_slice %3 {offsets = [4, 0], sizes = [1, 128], strides = [1, 1]} : vector<8x128xf32> to vector<1x128xf32>
    %21 = vector.broadcast %20 : vector<1x128xf32> to vector<8x128xf32>
    %22 = arith.maximumf %21, %4 : vector<8x128xf32>
    %23 = arith.addf %19, %22 : vector<8x128xf32>
    %24 = vector.extract_strided_slice %3 {offsets = [5, 0], sizes = [1, 128], strides = [1, 1]} : vector<8x128xf32> to vector<1x128xf32>
    %25 = vector.broadcast %24 : vector<1x128xf32> to vector<8x128xf32>
    %26 = arith.maximumf %25, %4 : vector<8x128xf32>
    %27 = arith.addf %23, %26 : vector<8x128xf32>
    %28 = vector.extract_strided_slice %3 {offsets = [6, 0], sizes = [1, 128], strides = [1, 1]} : vector<8x128xf32> to vector<1x128xf32>
    %29 = vector.broadcast %28 : vector<1x128xf32> to vector<8x128xf32>
    %30 = arith.maximumf %29, %4 : vector<8x128xf32>
    %31 = arith.addf %27, %30 : vector<8x128xf32>
    %32 = vector.extract_strided_slice %3 {offsets = [7, 0], sizes = [1, 128], strides = [1, 1]} : vector<8x128xf32> to vector<1x128xf32>
    %33 = vector.broadcast %32 : vector<1x128xf32> to vector<8x128xf32>
    %34 = arith.maximumf %33, %4 : vector<8x128xf32>
    %35 = arith.addf %31, %34 : vector<8x128xf32>
    %36 = vector.extract_strided_slice %3 {offsets = [0, 0], sizes = [1, 128], strides = [1, 1]} : vector<8x128xf32> to vector<1x128xf32>
    %cst = arith.constant 5.000000e-02 : f32
    %37 = vector.broadcast %cst : f32 to vector<1x128xf32>
    %38 = arith.mulf %37, %36 : vector<1x128xf32>
    %39 = vector.extract_strided_slice %3 {offsets = [1, 0], sizes = [1, 128], strides = [1, 1]} : vector<8x128xf32> to vector<1x128xf32>
    %cst_4 = arith.constant 1.000000e-01 : f32
    %40 = vector.broadcast %cst_4 : f32 to vector<1x128xf32>
    %41 = arith.mulf %40, %39 : vector<1x128xf32>
    %42 = arith.addf %38, %41 : vector<1x128xf32>
    %43 = vector.extract_strided_slice %3 {offsets = [2, 0], sizes = [1, 128], strides = [1, 1]} : vector<8x128xf32> to vector<1x128xf32>
    %cst_5 = arith.constant 2.000000e-01 : f32
    %44 = vector.broadcast %cst_5 : f32 to vector<1x128xf32>
    %45 = arith.mulf %44, %43 : vector<1x128xf32>
    %46 = arith.addf %42, %45 : vector<1x128xf32>
    %47 = vector.extract_strided_slice %3 {offsets = [3, 0], sizes = [1, 128], strides = [1, 1]} : vector<8x128xf32> to vector<1x128xf32>
    %cst_6 = arith.constant 3.000000e-01 : f32
    %48 = vector.broadcast %cst_6 : f32 to vector<1x128xf32>
    %49 = arith.mulf %48, %47 : vector<1x128xf32>
    %50 = arith.addf %46, %49 : vector<1x128xf32>
    %51 = vector.extract_strided_slice %3 {offsets = [4, 0], sizes = [1, 128], strides = [1, 1]} : vector<8x128xf32> to vector<1x128xf32>
    %cst_7 = arith.constant 5.000000e-01 : f32
    %52 = vector.broadcast %cst_7 : f32 to vector<1x128xf32>
    %53 = arith.mulf %52, %51 : vector<1x128xf32>
    %54 = arith.addf %50, %53 : vector<1x128xf32>
    %55 = vector.extract_strided_slice %3 {offsets = [5, 0], sizes = [1, 128], strides = [1, 1]} : vector<8x128xf32> to vector<1x128xf32>
    %cst_8 = arith.constant 0.699999988 : f32
    %56 = vector.broadcast %cst_8 : f32 to vector<1x128xf32>
    %57 = arith.mulf %56, %55 : vector<1x128xf32>
    %58 = arith.addf %54, %57 : vector<1x128xf32>
    %59 = vector.extract_strided_slice %3 {offsets = [6, 0], sizes = [1, 128], strides = [1, 1]} : vector<8x128xf32> to vector<1x128xf32>
    %cst_9 = arith.constant 8.000000e-01 : f32
    %60 = vector.broadcast %cst_9 : f32 to vector<1x128xf32>
    %61 = arith.mulf %60, %59 : vector<1x128xf32>
    %62 = arith.addf %58, %61 : vector<1x128xf32>
    %63 = vector.extract_strided_slice %3 {offsets = [7, 0], sizes = [1, 128], strides = [1, 1]} : vector<8x128xf32> to vector<1x128xf32>
    %cst_10 = arith.constant 0.899999976 : f32
    %64 = vector.broadcast %cst_10 : f32 to vector<1x128xf32>
    %65 = arith.mulf %64, %63 : vector<1x128xf32>
    %66 = arith.addf %62, %65 : vector<1x128xf32>
    %cst_11 = arith.constant -4.450000e+00 : f32
    %67 = vector.broadcast %cst_11 : f32 to vector<8x128xf32>
    %68 = arith.mulf %67, %4 : vector<8x128xf32>
    %69 = arith.addf %35, %68 : vector<8x128xf32>
    %70 = vector.broadcast %66 : vector<1x128xf32> to vector<8x128xf32>
    %71 = arith.subf %69, %70 : vector<8x128xf32>
    %c1_i32 = arith.constant 1 : i32
    %72 = arith.muli %arg0, %c1_i32 : i32
    %73 = arith.addi %72, %arg1 : i32
    %c0_i32_12 = arith.constant 0 : i32
    %74 = arith.cmpi slt, %73, %c0_i32_12 : i32
    %75 = arith.extui %74 : i1 to i32
    %c0_i32_13 = arith.constant 0 : i32
    %76 = arith.cmpi ne, %75, %c0_i32_13 : i32
    scf.if %76 {
      %c0_18 = arith.constant 0 : index
      %c0_19 = arith.constant 0 : index
      %83 = vector.load %arg5[%c0_18, %c0_19] : memref<8x128xf32, #tpu.memory_space<vmem>>, vector<8x128xf32>
      %84 = arith.addf %83, %71 : vector<8x128xf32>
      %c0_20 = arith.constant 0 : index
      %c0_21 = arith.constant 0 : index
      %85 = vector.load %arg5[%c0_20, %c0_21] : memref<8x128xf32, #tpu.memory_space<vmem>>, vector<8x128xf32>
      tpu.vector_store %arg5[%c0_20, %c0_21], %84 {strides = array<i32>} : memref<8x128xf32, #tpu.memory_space<vmem>>, vector<8x128xf32>,
    } else {
    }
    %c0_i32_14 = arith.constant 0 : i32
    %77 = arith.cmpi sge, %73, %c0_i32_14 : i32
    %78 = arith.extui %77 : i1 to i32
    %c0_i32_15 = arith.constant 0 : i32
    %79 = arith.cmpi ne, %78, %c0_i32_15 : i32
    scf.if %79 {
      %c128_i32 = arith.constant 128 : i32
      %83 = arith.muli %73, %c128_i32 : i32
      %84 = tpu.iota {dimensions = array<i32: 1>} : vector<8x128xi32>
      %85 = vector.broadcast %83 : i32 to vector<8x128xi32>
      %86 = arith.addi %85, %84 : vector<8x128xi32>
      %c0_18 = arith.constant 0 : index
      %c0_19 = arith.constant 0 : index
      %87 = vector.load %arg5[%c0_18, %c0_19] : memref<8x128xf32, #tpu.memory_space<vmem>>, vector<8x128xf32>
      %c16_i32 = arith.constant 16 : i32
      %88 = vector.broadcast %c16_i32 : i32 to vector<8x128xi32>
      %89 = arith.cmpi slt, %86, %88 : vector<8x128xi32>
      %cst_20 = arith.constant 0.000000e+00 : f32
      %90 = vector.broadcast %cst_20 : f32 to vector<8x128xf32>
      %91 = arith.select %89, %71, %90 : vector<8x128xi1>, vector<8x128xf32>
      %92 = arith.addf %87, %91 : vector<8x128xf32>
      %c0_21 = arith.constant 0 : index
      %c0_22 = arith.constant 0 : index
      %93 = vector.load %arg5[%c0_21, %c0_22] : memref<8x128xf32, #tpu.memory_space<vmem>>, vector<8x128xf32>
      tpu.vector_store %arg5[%c0_21, %c0_22], %92 {strides = array<i32>} : memref<8x128xf32, #tpu.memory_space<vmem>>, vector<8x128xf32>,
    } else {
    }
    %c0_i32_16 = arith.constant 0 : i32
    %80 = arith.cmpi eq, %arg1, %c0_i32_16 : i32
    %81 = arith.extui %80 : i1 to i32
    %c0_i32_17 = arith.constant 0 : i32
    %82 = arith.cmpi ne, %81, %c0_i32_17 : i32
    scf.if %82 {
      %c0_18 = arith.constant 0 : index
      %c0_19 = arith.constant 0 : index
      %83 = vector.load %arg5[%c0_18, %c0_19] : memref<8x128xf32, #tpu.memory_space<vmem>>, vector<8x128xf32>
      %84 = vector.shape_cast %83 : vector<8x128xf32> to vector<1x8x128xf32>
      %cst_20 = arith.constant dense<0.000000e+00> : vector<1xf32>
      %85 = vector.multi_reduction <add>, %84, %cst_20 [1, 2] : vector<1x8x128xf32> to vector<1xf32>
      %86 = vector.shape_cast %85 : vector<1xf32> to vector<1x1x1xf32>
      %87 = vector.extract %86[0, 0, 0] : f32 from vector<1x1x1xf32>
      %88 = vector.broadcast %87 : f32 to vector<1x1x1xf32>
      %c0_21 = arith.constant 0 : index
      %c0_22 = arith.constant 0 : index
      %c0_23 = arith.constant 0 : index
      %89 = vector.load %arg4[%c0_21, %c0_22, %c0_23] : memref<1x1x1xf32, #tpu.memory_space<vmem>>, vector<1x1x1xf32>
      tpu.vector_store %arg4[%c0_21, %c0_22, %c0_23], %88 {strides = array<i32>} : memref<1x1x1xf32, #tpu.memory_space<vmem>>, vector<1x1x1xf32>,
    } else {
    }
    return
  }
  func.func @transform_0(%arg0: i32, %arg1: i32) -> (i32, i32) {
    %c1_i32 = arith.constant 1 : i32
    %0 = arith.muli %arg0, %c1_i32 : i32
    %1 = arith.addi %0, %arg1 : i32
    %c0_i32 = arith.constant 0 : i32
    %2 = arith.minsi %1, %c0_i32 : i32
    %c0_i32_0 = arith.constant 0 : i32
    %c0_i32_1 = arith.constant 0 : i32
    return %c0_i32_0, %2 : i32, i32
  }
  func.func @transform_1(%arg0: i32, %arg1: i32) -> (i32, i32) {
    %c1_i32 = arith.constant 1 : i32
    %0 = arith.muli %arg0, %c1_i32 : i32
    %1 = arith.addi %0, %arg1 : i32
    %c0_i32 = arith.constant 0 : i32
    %2 = arith.minsi %1, %c0_i32 : i32
    %c0_i32_0 = arith.constant 0 : i32
    %c0_i32_1 = arith.constant 0 : i32
    return %c0_i32_0, %2 : i32, i32
  }
  func.func @transform_2(%arg0: i32, %arg1: i32) -> (i32, i32, i32) {
    %c0_i32 = arith.constant 0 : i32
    %c0_i32_0 = arith.constant 0 : i32
    %c0_i32_1 = arith.constant 0 : i32
    return %arg0, %c0_i32, %c0_i32_0 : i32, i32, i32
  }
}

</mosaic_0001>

<llo_original>
// kernel: quantile_loss.1
$region0: #{quantile_loss.1}
  #allocation0 [shape = 'u32[]', space=smem, size = 0x4, offset = 0x4, fixed_abs, tag = 'smem constant byte address 0x4 - core index']
  #allocation1 [shape = 'u32[144,128]{1,0:T(1,128)}', space=vmem, size = 0x12000, scoped, tag = 'internal scratch']
  #allocation2 [shape = 'f32[8,128]{1,0:T(8,128)}', space=vmem, size = 0x1000, scoped, tag = 'scratch operand']
  %s0 = inlined_call_operand.vmem [shape: f32[8,16], index: 0, kind: input, shape index: {}]
  %s1 = inlined_call_operand.vmem [shape: f32[8,16], index: 1, kind: input, shape index: {}]
  %s2 = inlined_call_operand.hbm [shape: f32[1,1,1], index: 2, kind: output, shape index: {}]
  %s3 = sld [smem:[#allocation0]]
  $region34: #{quantile_loss.1} parent=0
    _
  %s5 = ssub.s32 1, %s3
  %s6 = scalar_select 0, %s5, %s3
  $region1: #{quantile_loss.1} parent=0
    #allocation3 [shape = 'u8[512]{0}', space=vmem, size = 0x400, scoped, tag = 'output window, operand 0, single buffered']
    #allocation4 [shape = 's32[1]{0}', space=sflag, size = 0x4, scoped, tag = 'scoped memory for quantile_loss.1']
    %7 = vsyncpa [#allocation4], 0
    // Predicated region
    $region2: #{quantile_loss.1} parent=1 // pred_check
      _
    $region3: #{quantile_loss.1} parent=1 // pred_check_branch
      %9 = sbr.rel (0) target = $region5
    $region4: #{quantile_loss.1} parent=1 // pred_region
      %s10 = sadd.s32 0, 0
      %p11 = scmp.lt.s32.totalorder %s10, 0
      %s12 = scalar_select %p11, %s10, 0
      %p13 = scmp.lt.s32.totalorder %s12, 0
      %s14 = scalar_select %p13, %s12, 0
      %s15 = smul.addr %s14, 8
      %s16 = scalar_lea.vmem %s0, %s15
      %s17 = sadd.s32 0, 0
      %p18 = scmp.lt.s32.totalorder %s17, 0
      %s19 = scalar_select %p18, %s17, 0
    $region5: #{quantile_loss.1} parent=1 // pred_fallthru
      _
    // Predicated region
    $region6: #{quantile_loss.1} parent=1 // pred_check
      _
    $region7: #{quantile_loss.1} parent=1 // pred_check_branch
      %21 = sbr.rel (0) target = $region9
    $region8: #{quantile_loss.1} parent=1 // pred_region
      %s22 = sadd.s32 0, 0
      %p23 = scmp.lt.s32.totalorder %s22, 0
      %s24 = scalar_select %p23, %s22, 0
      %p25 = scmp.lt.s32.totalorder %s24, 0
      %s26 = scalar_select %p25, %s24, 0
      %s27 = smul.addr %s26, 8
      %s28 = scalar_lea.vmem %s1, %s27
      %s29 = sadd.s32 0, 0
      %p30 = scmp.lt.s32.totalorder %s29, 0
      %s31 = scalar_select %p30, %s29, 0
    $region9: #{quantile_loss.1} parent=1 // pred_fallthru
      _
    %s32 = sadd.s32 0, 0
    %p33 = scmp.lt.s32.totalorder %s32, 0
    %s34 = scalar_select %p33, %s32, 0
    %p35 = scmp.lt.s32.totalorder %s34, 0
    %s36 = scalar_select %p35, %s34, 0
    %s37 = smul.addr %s36, 8
    %s38 = scalar_lea.vmem %s0, %s37
    %s39 = sadd.s32 0, 0
    %p40 = scmp.lt.s32.totalorder %s39, 0
    %s41 = scalar_select %p40, %s39, 0
    %p42 = scmp.lt.s32.totalorder %s41, 0
    %s43 = scalar_select %p42, %s41, 0
    %s44 = smul.addr %s43, 8
    %s45 = scalar_lea.vmem %s1, %s44
    %s46 = sadd.s32 0, 0
    %p47 = scmp.lt.s32.totalorder %s46, 0
    %s48 = scalar_select %p47, %s46, 0
    %p49 = scmp.lt.s32.totalorder %s48, 0
    %s50 = scalar_select %p49, %s48, 0
    %s51 = smul.addr %s50, 8
    %s52 = scalar_lea.vmem %s0, %s51
    %s53 = sadd.s32 0, 0
    %p54 = scmp.lt.s32.totalorder %s53, 0
    %s55 = scalar_select %p54, %s53, 0
    %s56 = sadd.s32 0, 0
    %p57 = scmp.lt.s32.totalorder %s56, 0
    %s58 = scalar_select %p57, %s56, 0
    %p59 = scmp.lt.s32.totalorder %s58, 0
    %s60 = scalar_select %p59, %s58, 0
    %s61 = smul.addr %s60, 8
    %s62 = scalar_lea.vmem %s1, %s61
    %s63 = sadd.s32 0, 0
    %p64 = scmp.lt.s32.totalorder %s63, 0
    %s65 = scalar_select %p64, %s63, 0
    %p66 = scmp.eq.s32.totalorder 0, 0
    // Predicated region
    $region10: #{quantile_loss.1} parent=1 // pred_check
      %p67 = pneg %p66
    $region11: #{quantile_loss.1} parent=1 // pred_check_branch
      %69 = sbr.rel (%p67) target = $region13
    $region12: #{quantile_loss.1} parent=1 // pred_region
      %70 = vst [vmem:[#allocation2] sm:$0xff] 0.0
    $region13: #{quantile_loss.1} parent=1 // pred_fallthru
      _
    %v71 = vld [vmem:[%s52] sm:$0xff]
    %v72 = vld [vmem:[%s62] sm:$0xff]
    %v73 = vlaneseq
    %v74 = vshrl.u32 %v73, 7
    %v75 = vsub.s32 0, %v74
    %v76 = vrot.slane %v71, %v75
    %v77 = vmax.f32 %v76, %v72
    %v78 = vlaneseq
    %v79 = vshrl.u32 %v78, 7
    %v80 = vsub.s32 1, %v79
    %v81 = vrot.slane %v71, %v80
    %v82 = vmax.f32 %v81, %v72
    %v83 = vadd.f32 %v77, %v82
    %v84 = vlaneseq
    %v85 = vshrl.u32 %v84, 7
    %v86 = vsub.s32 2, %v85
    %v87 = vrot.slane %v71, %v86
    %v88 = vmax.f32 %v87, %v72
    %v89 = vadd.f32 %v83, %v88
    %v90 = vlaneseq
    %v91 = vshrl.u32 %v90, 7
    %v92 = vsub.s32 3, %v91
    %v93 = vrot.slane %v71, %v92
    %v94 = vmax.f32 %v93, %v72
    %v95 = vadd.f32 %v89, %v94
    %v96 = vlaneseq
    %v97 = vshrl.u32 %v96, 7
    %v98 = vsub.s32 4, %v97
    %v99 = vrot.slane %v71, %v98
    %v100 = vmax.f32 %v99, %v72
    %v101 = vadd.f32 %v95, %v100
    %v102 = vlaneseq
    %v103 = vshrl.u32 %v102, 7
    %v104 = vsub.s32 5, %v103
    %v105 = vrot.slane %v71, %v104
    %v106 = vmax.f32 %v105, %v72
    %v107 = vadd.f32 %v101, %v106
    %v108 = vlaneseq
    %v109 = vshrl.u32 %v108, 7
    %v110 = vsub.s32 6, %v109
    %v111 = vrot.slane %v71, %v110
    %v112 = vmax.f32 %v111, %v72
    %v113 = vadd.f32 %v107, %v112
    %v114 = vlaneseq
    %v115 = vshrl.u32 %v114, 7
    %v116 = vsub.s32 7, %v115
    %v117 = vrot.slane %v71, %v116
    %v118 = vmax.f32 %v117, %v72
    %v119 = vadd.f32 %v113, %v118
    %v120 = vmul.f32 %v71, 0.05
    %v121 = vmul.f32 %v71, 0.1
    %v123 = vrot.slane %v121, 1
    %v125 = vadd.f32 %v120, %v123
    %v126 = vmul.f32 %v71, 0.2
    %v128 = vrot.slane %v126, 2
    %v130 = vadd.f32 %v125, %v128
    %v131 = vmul.f32 %v71, 0.3
    %v133 = vrot.slane %v131, 3
    %v135 = vadd.f32 %v130, %v133
    %v136 = vmul.f32 %v71, 0.5
    %v138 = vrot.slane %v136, 4
    %v140 = vadd.f32 %v135, %v138
    %v141 = vmul.f32 %v71, 0.7
    %v143 = vrot.slane %v141, 5
    %v145 = vadd.f32 %v140, %v143
    %v146 = vmul.f32 %v71, 0.8
    %v148 = vrot.slane %v146, 6
    %v150 = vadd.f32 %v145, %v148
    %v151 = vmul.f32 %v71, 0.9
    %v153 = vrot.slane %v151, 7
    %v155 = vadd.f32 %v150, %v153
    %v156 = vmul.f32 %v72, -4.45
    %v157 = vadd.f32 %v119, %v156
    %v158 = vlaneseq
    %v159 = vshrl.u32 %v158, 7
    %v160 = vsub.s32 0, %v159
    %v161 = vrot.slane %v155, %v160
    %v162 = vsub.f32 %v157, %v161
    %s163 = sadd.s32 0, 0
    %p164 = scmp.lt.s32.totalorder %s163, 0
    // Predicated region
    $region14: #{quantile_loss.1} parent=1 // pred_check
      %p165 = pneg %p164
    $region15: #{quantile_loss.1} parent=1 // pred_check_branch
      %167 = sbr.rel (%p165) target = $region17
    $region16: #{quantile_loss.1} parent=1 // pred_region
      %v168 = vld [vmem:[#allocation2] sm:$0xff]
      %v169 = vadd.f32 %v168, %v162
      %170 = vst [vmem:[#allocation2] sm:$0xff] %v169
    $region17: #{quantile_loss.1} parent=1 // pred_fallthru
      _
    %p171 = scmp.ge.s32.totalorder %s163, 0
    // Predicated region
    $region18: #{quantile_loss.1} parent=1 // pred_check
      %p172 = pneg %p171
    $region19: #{quantile_loss.1} parent=1 // pred_check_branch
      %174 = sbr.rel (%p172) target = $region21
    $region20: #{quantile_loss.1} parent=1 // pred_region
      %s175 = smul.u32 %s163, 128
      %v176 = vlaneseq
      %v177 = vand.u32 %v176, 127
      %v178 = vstv %s175
      %v179 = vadd.s32 %v178, %v177
      %v180 = vld [vmem:[#allocation2] sm:$0xff]
      %vm181 = vcmp.lt.s32.totalorder %v179, 16
      %v182 = vsel %vm181, %v162, 0.0
      %v183 = vadd.f32 %v180, %v182
      %184 = vst [vmem:[#allocation2] sm:$0xff] %v183
    $region21: #{quantile_loss.1} parent=1 // pred_fallthru
      _
    // Predicated region
    $region22: #{quantile_loss.1} parent=1 // pred_check
      %p185 = pneg %p66
    $region23: #{quantile_loss.1} parent=1 // pred_check_branch
      %187 = sbr.rel (%p185) target = $region25
    $region24: #{quantile_loss.1} parent=1 // pred_region
      %v188 = vld [vmem:[#allocation2] sm:$0xff]
      %189 = vadd.xlane.f32.xlu0 %v188
      %v190 = vpop.xlane.xlu0 %189
      %v191 = vrot.slane %v190, 4
      %v192 = vadd.f32 %v190, %v191
      %v193 = vrot.slane %v192, 2
      %v194 = vadd.f32 %v192, %v193
      %v195 = vrot.slane %v194, 1
      %v196 = vadd.f32 %v194, %v195
      %s197 = vtos %v196
      %v198 = vstv %s197
      %vm199 = vcmask 0
      %200 = vst.msk [vmem:[#allocation3] sm:$0x1] %vm199, %v198
    $region25: #{quantile_loss.1} parent=1 // pred_fallthru
      _
    // Predicated region
    $region26: #{quantile_loss.1} parent=1 // pred_check
      _
    $region27: #{quantile_loss.1} parent=1 // pred_check_branch
      %202 = sbr.rel (0) target = $region29
    $region28: #{quantile_loss.1} parent=1 // pred_region
      %s204 = ssub.s32 16, 16
      %205 = vsyncadd [#allocation4], %s204
      %s207 = sshll.u32 [#allocation3], 4
      %s208 = int_to_ptr.vmem [resolvable:$true] %s207
      %210 = dma.vmem_to_hbm [thread:$0]  %s208, 16, %s2, [#allocation4]
    $region29: #{quantile_loss.1} parent=1 // pred_fallthru
      _
    // Predicated region
    $region30: #{quantile_loss.1} parent=1 // pred_check
      _
    $region31: #{quantile_loss.1} parent=1 // pred_check_branch
      %212 = sbr.rel (0) target = $region33
    $region32: #{quantile_loss.1} parent=1 // pred_region
      %213 = dma.done [#allocation4], 16
    $region33: #{quantile_loss.1} parent=1 // pred_fallthru
      _
    %214 = vsyncpa [#allocation4], 1

</llo_original>
